<compile_context>
chip_gen: v7x
topology: tpu7x:2x2x1
jax: 0.10.0
libtpu: 0.0.40
codegen_flags: <defaults>
</compile_context>

<pallas_src>
import jax
import jax.numpy as jnp
from jax.experimental import pallas as pl
from jax.experimental.pallas import tpu as pltpu

# ----------------------------- model config (toy sizes) ----------------------
N_SPECTRAL = 64     # n_spectral_features (28000 in the real model)
N_CNMR = 8          # n_Cfeatures         (40 in the real model)
N_MOL = 4           # n_molfeatures       (5 in the real model)
N_SUBSTRUCT = 6     # n_substructures
SEQ_LEN = N_SPECTRAL + N_CNMR + N_MOL

CONV1_C, CONV1_K, CONV1_S = 8, 5, 2
CONV2_C, CONV2_K, CONV2_S = 16, 3, 2
FC_HIDDEN = 32

L1 = (N_SPECTRAL - CONV1_K) // CONV1_S + 1       # 30  conv1 output length
L2 = (L1 - CONV2_K) // CONV2_S + 1               # 14  conv2 output length
PHASE = N_SPECTRAL // 4                          # 16  entries per stride-4 phase
FLAT = CONV2_C * L2                              # 224 flattened conv features (NCW, C-major)
CONCAT = FLAT + N_CNMR + N_MOL                   # 236 fc1 input dim
N_CM = N_CNMR + N_MOL                            # 12  cnmr + mol-formula features

LANE = 128
GROUP = 16                                       # lanes per conv-channel group
N_TAPS = 7                                       # distinct polyphase tap segments for conv1
N_SLABS = N_TAPS + 1                             # + 1 slab holding the cnmr/mol features
IN_LANES = N_SLABS * LANE                        # 1024 packed input lanes per sample
Z_LANES = CONV2_C * GROUP                        # 256  conv2 output, 16-lane channel slots
FC_K = Z_LANES + LANE                            # 384  fused fc1 contraction dim (128-mult)
OUT_LANES = LANE                                 # lane-dense head output slab width

MAX_BATCH_TILE = 512                             # rows per grid step (review: 256-1024)

# Layout preconditions for the polyphase / lane-packed formulation.
assert N_SPECTRAL % 4 == 0 and L1 % 2 == 0
assert CONV1_C * GROUP == LANE
assert L1 // 2 + 1 <= GROUP and L2 + 2 <= GROUP
assert N_CM <= LANE and N_SUBSTRUCT <= OUT_LANES and FC_K % LANE == 0


# ----------------------------- fused Pallas kernel ---------------------------
def _make_kernel(sub_rows: int, n_chunks: int):
    """Kernel over one (BT, 1024) batch block; inner pl.loop over sub-chunks of
    `sub_rows` rows bounds the vreg working set."""

    def kernel(x_ref,      # (BT, 1024) f32  7 replicated polyphase tap slabs + cm slab
               w1_ref,     # (8, 128)   f32  lane-replicated conv1 taps (rows 0-4) + bias (5)
               we_ref,     # (128, 256) bf16 conv2-as-matmul weight for even conv1 outputs
               wo_ref,     # (128, 256) bf16 conv2-as-matmul weight for odd  conv1 outputs
               b2_ref,     # (1, 256)   f32  conv2 bias in slot layout
               wfc_ref,    # (384, 32)  bf16 fused fc1 weight  [conv slots | cnmr/mol | pad]
               bfc_ref,    # (1, 32)    f32  fc1 bias
               wh_ref,     # (32, 128)  bf16 head weight, lane-padded
               bh_ref,     # (1, 128)   f32  head bias, lane-padded
               out_ref):   # (BT, 128)  f32  lane-dense sigmoid output slab
        w1 = w1_ref[...]                                   # tiny, load once per grid step
        b1row = w1[5:6, :]                                 # (1, 128)

        @pl.loop(0, n_chunks)
        def _(i):
            r = pl.multiple_of(i * sub_rows, sub_rows)

            def tap(s):                                    # (SUB, 128) f32 slab s
                return x_ref[pl.ds(r, sub_rows), pl.ds(s * LANE, LANE)]

            # conv1 (Cin=1, K=5, stride=2) + ReLU, lane-packed: channel c lives in lanes
            # [16c : 16c+15]; lane 16c+15 is a zero-weighted pad lane.  Pure f32 VPU FMAs
            # against lane-replicated weight rows (no SMEM scalars).
            e = (b1row + w1[0:1, :] * tap(0) + w1[1:2, :] * tap(1)
                 + w1[2:3, :] * tap(2) + w1[3:4, :] * tap(3) + w1[4:5, :] * tap(4))
            o = (b1row + w1[0:1, :] * tap(2) + w1[1:2, :] * tap(3)
                 + w1[2:3, :] * tap(4) + w1[3:4, :] * tap(5) + w1[4:5, :] * tap(6))
            e = jnp.maximum(e, 0.0).astype(jnp.bfloat16)   # even conv1 outputs, packed
            o = jnp.maximum(o, 0.0).astype(jnp.bfloat16)   # odd  conv1 outputs, packed

            # conv2 (Cin=8, K=3, stride=2) + bias as two MXU matmuls whose N dimension is
            # already the 16-lane-per-channel slot layout consumed by fc1 (no flatten/concat
            # of a (B, C2*L2) activation).
            z = (jnp.dot(e, we_ref[...], preferred_element_type=jnp.float32)
                 + jnp.dot(o, wo_ref[...], preferred_element_type=jnp.float32)
                 + b2_ref[...])
            z = jnp.maximum(z, 0.0).astype(jnp.bfloat16)   # (SUB, 256)

            # fc1: ONE fused K=384 matmul over [conv2 slots | cnmr+mol slab].
            act = jnp.concatenate([z, tap(7).astype(jnp.bfloat16)], axis=1)   # (SUB, 384)
            h = (jnp.dot(act, wfc_ref[...], preferred_element_type=jnp.float32)
                 + bfc_ref[...])
            h = jnp.maximum(h, 0.0).astype(jnp.bfloat16)   # (SUB, 32)

            # Per-substructure linear head (lane-padded to 128) + sigmoid (EUP tanh).
            logits = (jnp.dot(h, wh_ref[...], preferred_element_type=jnp.float32)
                      + bh_ref[...])
            out_ref[pl.ds(r, sub_rows), :] = 0.5 * (jnp.tanh(0.5 * logits) + 1.0)

    return kernel


# ----------------------------- host-side packing ------------------------------
def _round_up(x, m):
    return ((x + m - 1) // m) * m


def _tiling(batch):
    """Pick (batch_tile, padded_batch, sub_rows): big tiles to amortize per-step overhead,
    grid >= 2 when possible so both v7x TensorCores get work."""
    b8 = _round_up(max(batch, 1), 8)
    if b8 <= 8:
        bt = 8
    elif b8 <= 2 * MAX_BATCH_TILE:
        bt = _round_up(pl.cdiv(b8, 2), 8)
    else:
        bt = MAX_BATCH_TILE
    b_pad = _round_up(b8, bt)
    sub = next(s for s in (32, 16, 8) if bt % s == 0)
    return bt, b_pad, sub


def _pack_inputs(spectrum, b_pad):
    """(B, 1, SEQ_LEN) NCW input -> (b_pad, 1024) f32 slab: 7 polyphase tap segments, each
    replicated across the 8 conv1 channel groups, plus one slab with the cnmr/mol features.
    Pure layout plumbing so both stride-2 convs become contiguous-lane ops in-kernel."""
    B = spectrum.shape[0]
    x = spectrum[:, 0, :].astype(jnp.float32)
    spec = x[:, :N_SPECTRAL]
    cm = x[:, N_SPECTRAL:]
    ph = spec.reshape(B, PHASE, 4).transpose(0, 2, 1)            # ph[:, r, q] = spec[:, 4q+r]
    ph_shift = jnp.concatenate(                                  # ph_r[q+1] (r = 0..2)
        [ph[:, :3, 1:], jnp.zeros((B, 3, 1), jnp.float32)], axis=2)
    taps = jnp.concatenate([ph, ph_shift], axis=1)               # (B, 7, 16)
    taps = jnp.broadcast_to(taps[:, :, None, :], (B, N_TAPS, CONV1_C, GROUP))
    taps = taps.reshape(B, N_TAPS * LANE)                        # replicate across channels
    cm_slab = jnp.pad(cm, ((0, 0), (0, LANE - N_CM)))
    packed = jnp.concatenate([taps, cm_slab], axis=1)            # (B, 1024)
    if b_pad != B:
        packed = jnp.pad(packed, ((0, b_pad - B), (0, 0)))
    return packed


# ----------------------------- parameter init ---------------------------------
def _xavier_uniform(key, shape):
    """Matches nn.init.xavier_uniform_ fan computation for Linear/Conv weights."""
    if len(shape) == 2:          # Linear: (out, in)
        fan_in, fan_out = shape[1], shape[0]
    else:                        # Conv1d: (out, in, k)
        rf = shape[2]
        fan_in, fan_out = shape[1] * rf, shape[0] * rf
    limit = (6.0 / (fan_in + fan_out)) ** 0.5
    return jax.random.uniform(key, shape, jnp.float32, -limit, limit)


def init_params(key):
    """PyTorch-layout parameters: non-1D Xavier-uniform, 1D (biases) zeros."""
    ks = jax.random.split(key, 4)
    return {
        "conv1_w": _xavier_uniform(ks[0], (CONV1_C, 1, CONV1_K)),
        "conv1_b": jnp.zeros((CONV1_C,), jnp.float32),
        "conv2_w": _xavier_uniform(ks[1], (CONV2_C, CONV1_C, CONV2_K)),
        "conv2_b": jnp.zeros((CONV2_C,), jnp.float32),
        "fc1_w": _xavier_uniform(ks[2], (FC_HIDDEN, CONCAT)),        # torch (out, in)
        "fc1_b": jnp.zeros((FC_HIDDEN,), jnp.float32),
        "head_w": _xavier_uniform(ks[3], (N_SUBSTRUCT, FC_HIDDEN)),  # torch (out, in)
        "head_b": jnp.zeros((N_SUBSTRUCT,), jnp.float32),
    }


def pack_params(params):
    """One-time rearrangement of torch-layout params into kernel operands."""
    f32, bf16 = jnp.float32, jnp.bfloat16

    # conv1: lane-replicated rows (channel c in lanes [16c:16c+16]; pad lane 15 zeroed).
    lane_mask = jnp.ones((GROUP,), f32).at[GROUP - 1].set(0.0)
    w1t = params["conv1_w"][:, 0, :].astype(f32)                       # (8, 5) [c, t]
    w1_rows = (w1t.T[:, :, None] * lane_mask).reshape(CONV1_K, LANE)   # (5, 128)
    b1_row = (params["conv1_b"].astype(f32)[:, None] * lane_mask).reshape(1, LANE)
    w1_pack = jnp.concatenate([w1_rows, b1_row, jnp.zeros((2, LANE), f32)], axis=0)

    # conv2 as matmul: Z[:, 16co+j] = sum_ci ( w2[co,ci,0]*E[:,16ci+j] + w2[co,ci,1]*O[:,16ci+j]
    #                                        + w2[co,ci,2]*E[:,16ci+j+1] ) + b2[co],  j = 0..13
    w2 = params["conv2_w"].astype(f32)                                 # (16, 8, 3)
    sel0 = jnp.zeros((GROUP, GROUP), f32).at[jnp.arange(L2), jnp.arange(L2)].set(1.0)
    sel2 = jnp.zeros((GROUP, GROUP), f32).at[jnp.arange(1, L2 + 1), jnp.arange(L2)].set(1.0)
    we = (jnp.einsum("oc,qj->cqoj", w2[:, :, 0], sel0)
          + jnp.einsum("oc,qj->cqoj", w2[:, :, 2], sel2)).reshape(LANE, Z_LANES)
    wo = jnp.einsum("oc,qj->cqoj", w2[:, :, 1], sel0).reshape(LANE, Z_LANES)
    jvalid = jnp.concatenate([jnp.ones((L2,), f32), jnp.zeros((GROUP - L2,), f32)])
    b2_row = (params["conv2_b"].astype(f32)[:, None] * jvalid).reshape(1, Z_LANES)

    # fc1 fused weight: rows 0..255 = conv slots (row 16co+j <- torch flat index co*14+j),
    # rows 256..267 = cnmr/mol features, remaining rows zero.
    fc1_w = params["fc1_w"].astype(f32)                                # (32, 236)
    wconv = fc1_w[:, :FLAT].reshape(FC_HIDDEN, CONV2_C, L2)
    wconv = jnp.pad(wconv, ((0, 0), (0, 0), (0, GROUP - L2)))
    wconv = wconv.transpose(1, 2, 0).reshape(Z_LANES, FC_HIDDEN)
    wcm = jnp.pad(fc1_w[:, FLAT:].T, ((0, LANE - N_CM), (0, 0)))       # (128, 32)
    wfc = jnp.concatenate([wconv, wcm], axis=0).astype(bf16)           # (384, 32)
    bfc = params["fc1_b"].astype(f32).reshape(1, FC_HIDDEN)

    # head, pre-transposed and lane-padded to 128.
    wh = jnp.zeros((FC_HIDDEN, OUT_LANES), f32).at[:, :N_SUBSTRUCT].set(
        params["head_w"].astype(f32).T).astype(bf16)
    bh = jnp.zeros((1, OUT_LANES), f32).at[0, :N_SUBSTRUCT].set(
        params["head_b"].astype(f32))

    return {"w1": w1_pack, "we": we.astype(bf16), "wo": wo.astype(bf16), "b2": b2_row,
            "wfc": wfc, "bfc": bfc, "wh": wh, "bh": bh}


# ----------------------------- forward pass -----------------------------------
def convolutional_model_forward(kparams, x):
    """Args:
        kparams: dict from pack_params()
        x: ((B, 1, seq_len) spectrum tensor, tuple-of-smiles-strings)
    Returns:
        (B, n_substructures) sigmoid substructure probabilities."""
    spectrum, _smiles = x        # SMILES are metadata only; not used in the compute path
    B = spectrum.shape[0]
    bt, b_pad, sub = _tiling(B)
    packed = _pack_inputs(spectrum, b_pad)
    grid = (b_pad // bt,)
    kernel = _make_kernel(sub, bt // sub)

    flops_per_row = 2 * (2 * CONV1_K * LANE          # lane-packed conv1 VPU FMAs
                         + 2 * LANE * Z_LANES        # conv2 as two K=128 matmuls
                         + FC_K * FC_HIDDEN          # fused fc1
                         + FC_HIDDEN * OUT_LANES)    # head
    param_bytes = sum(int(v.size) * v.dtype.itemsize for v in kparams.values())
    cost = pl.CostEstimate(
        flops=int(b_pad * flops_per_row),
        transcendentals=int(b_pad * OUT_LANES),
        bytes_accessed=int(packed.size * 4 + b_pad * OUT_LANES * 4 + param_bytes),
    )

    def full(a):
        return pl.BlockSpec(a.shape, lambda i: (0,) * a.ndim)

    # VMEM budget (worst case BT=512): ~2 MiB in + 0.25 MiB out, double-buffered, plus
    # ~0.2 MiB of weights -> well under the default scoped limit on v5e/v6e/v7x.
    out = pl.pallas_call(
        kernel,
        out_shape=jax.ShapeDtypeStruct((b_pad, OUT_LANES), jnp.float32),
        grid=grid,
        in_specs=[
            pl.BlockSpec((bt, IN_LANES), lambda i: (i, 0)),            # packed inputs
            full(kparams["w1"]), full(kparams["we"]), full(kparams["wo"]),
            full(kparams["b2"]), full(kparams["wfc"]), full(kparams["bfc"]),
            full(kparams["wh"]), full(kparams["bh"]),
        ],
        out_specs=pl.BlockSpec((bt, OUT_LANES), lambda i: (i, 0)),
        compiler_params=pltpu.CompilerParams(
            dimension_semantics=("parallel",),
        ),
        cost_estimate=cost,
    )(packed, kparams["w1"], kparams["we"], kparams["wo"], kparams["b2"],
      kparams["wfc"], kparams["bfc"], kparams["wh"], kparams["bh"])

    return out[:B, :N_SUBSTRUCT]


# ----------------------------- pure-JAX reference -----------------------------
def _reference_forward(params, spectrum):
    """f32 reference of the same forward (for tolerance validation)."""
    x = spectrum[:, 0, :].astype(jnp.float32)
    spec, cm = x[:, :N_SPECTRAL], x[:, N_SPECTRAL:]

    def conv1d(h, w, b, stride):
        k = w.shape[2]
        lout = (h.shape[2] - k) // stride + 1
        win = jnp.stack([h[:, :, p * stride:p * stride + k] for p in range(lout)], axis=2)
        return jnp.einsum("bcpk,ock->bop", win, w) + b[None, :, None]

    h1 = jax.nn.relu(conv1d(spec[:, None, :], params["conv1_w"], params["conv1_b"], CONV1_S))
    h2 = jax.nn.relu(conv1d(h1, params["conv2_w"], params["conv2_b"], CONV2_S))
    fc_in = jnp.concatenate([h2.reshape(h2.shape[0], -1), cm], axis=1)
    h = jax.nn.relu(fc_in @ params["fc1_w"].T + params["fc1_b"])
    logits = h @ params["head_w"].T + params["head_b"]
    return jax.nn.sigmoid(logits)


# ----------------------------- main -------------------------------------------
if __name__ == "__main__":
    key = jax.random.PRNGKey(0)
    k_param, k_data = jax.random.split(key)

    torch_layout_params = init_params(k_param)
    kparams = pack_params(torch_layout_params)

    batch = 2
    spectrum = jax.random.uniform(k_data, (batch, 1, SEQ_LEN), jnp.float32)
    smiles = ("CCO", "c1ccccc1")  # placeholder SMILES metadata (unused numerically)

    out = convolutional_model_forward(kparams, (spectrum, smiles))
    out = jax.block_until_ready(out)

    assert out.shape == (batch, N_SUBSTRUCT), out.shape
    assert bool(jnp.all((out >= 0.0) & (out <= 1.0))), "sigmoid range violated"

    ref = _reference_forward(torch_layout_params, spectrum)
    max_err = float(jnp.max(jnp.abs(out - ref)))
    assert max_err < 3e-2, f"kernel/reference mismatch: max abs err {max_err}"

    print("KERNEL_OK")
</pallas_src>

<mosaic_0001>
module attributes {stable_mosaic.version = 11 : i64} {
  func.func @kernel(%arg0: i32, %arg1: memref<8x1024xf32, #tpu.memory_space<vmem>>, %arg2: memref<8x128xf32, #tpu.memory_space<vmem>>, %arg3: memref<128x256xbf16, #tpu.memory_space<vmem>>, %arg4: memref<128x256xbf16, #tpu.memory_space<vmem>>, %arg5: memref<1x256xf32, #tpu.memory_space<vmem>>, %arg6: memref<384x32xbf16, #tpu.memory_space<vmem>>, %arg7: memref<1x32xf32, #tpu.memory_space<vmem>>, %arg8: memref<32x128xbf16, #tpu.memory_space<vmem>>, %arg9: memref<1x128xf32, #tpu.memory_space<vmem>>, %arg10: memref<8x128xf32, #tpu.memory_space<vmem>>) attributes {dimension_semantics = [#tpu.dimension_semantics<parallel>], iteration_bounds = array<i64: 1>, scalar_prefetch = 0 : i64, scratch_operands = 0 : i64, tpu.core_type = #tpu.core_type<tc>, window_params = [{transform_indices = @transform_0, window_bounds = array<i64: 8, 1024>}, {pipeline_mode = #tpu.pipeline_mode<synchronous>, transform_indices = @transform_1, window_bounds = array<i64: 8, 128>}, {pipeline_mode = #tpu.pipeline_mode<synchronous>, transform_indices = @transform_2, window_bounds = array<i64: 128, 256>}, {pipeline_mode = #tpu.pipeline_mode<synchronous>, transform_indices = @transform_3, window_bounds = array<i64: 128, 256>}, {pipeline_mode = #tpu.pipeline_mode<synchronous>, transform_indices = @transform_4, window_bounds = array<i64: 1, 256>}, {pipeline_mode = #tpu.pipeline_mode<synchronous>, transform_indices = @transform_5, window_bounds = array<i64: 384, 32>}, {pipeline_mode = #tpu.pipeline_mode<synchronous>, transform_indices = @transform_6, window_bounds = array<i64: 1, 32>}, {pipeline_mode = #tpu.pipeline_mode<synchronous>, transform_indices = @transform_7, window_bounds = array<i64: 32, 128>}, {pipeline_mode = #tpu.pipeline_mode<synchronous>, transform_indices = @transform_8, window_bounds = array<i64: 1, 128>}, {transform_indices = @transform_9, window_bounds = array<i64: 8, 128>}]} {
    %c0 = arith.constant 0 : index
    %c0_0 = arith.constant 0 : index
    %0 = vector.load %arg2[%c0, %c0_0] : memref<8x128xf32, #tpu.memory_space<vmem>>, vector<8x128xf32>
    %1 = vector.extract_strided_slice %0 {offsets = [5, 0], sizes = [1, 128], strides = [1, 1]} : vector<8x128xf32> to vector<1x128xf32>
    %c0_i32 = arith.constant 0 : i32
    %c1_i32 = arith.constant 1 : i32
    %2 = arith.muli %c0_i32, %c1_i32 : i32
    %c0_i32_1 = arith.constant 0 : i32
    %3 = arith.addi %c0_i32_1, %2 : i32
    %c8_i32 = arith.constant 8 : i32
    %4 = arith.muli %3, %c8_i32 : i32
    %5 = tpu.assume_multiple %4, 8 : i32
    %6 = vector.extract_strided_slice %0 {offsets = [0, 0], sizes = [1, 128], strides = [1, 1]} : vector<8x128xf32> to vector<1x128xf32>
    %7 = arith.index_cast %5 : i32 to index
    %c0_2 = arith.constant 0 : index
    %8 = vector.load %arg1[%7, %c0_2] : memref<8x1024xf32, #tpu.memory_space<vmem>>, vector<8x128xf32>
    %9 = vector.broadcast %6 : vector<1x128xf32> to vector<8x128xf32>
    %10 = arith.mulf %9, %8 : vector<8x128xf32>
    %11 = vector.broadcast %1 : vector<1x128xf32> to vector<8x128xf32>
    %12 = arith.addf %11, %10 : vector<8x128xf32>
    %13 = vector.extract_strided_slice %0 {offsets = [1, 0], sizes = [1, 128], strides = [1, 1]} : vector<8x128xf32> to vector<1x128xf32>
    %14 = arith.index_cast %5 : i32 to index
    %c128 = arith.constant 128 : index
    %15 = vector.load %arg1[%14, %c128] : memref<8x1024xf32, #tpu.memory_space<vmem>>, vector<8x128xf32>
    %16 = vector.broadcast %13 : vector<1x128xf32> to vector<8x128xf32>
    %17 = arith.mulf %16, %15 : vector<8x128xf32>
    %18 = arith.addf %12, %17 : vector<8x128xf32>
    %19 = vector.extract_strided_slice %0 {offsets = [2, 0], sizes = [1, 128], strides = [1, 1]} : vector<8x128xf32> to vector<1x128xf32>
    %20 = arith.index_cast %5 : i32 to index
    %c256 = arith.constant 256 : index
    %21 = vector.load %arg1[%20, %c256] : memref<8x1024xf32, #tpu.memory_space<vmem>>, vector<8x128xf32>
    %22 = vector.broadcast %19 : vector<1x128xf32> to vector<8x128xf32>
    %23 = arith.mulf %22, %21 : vector<8x128xf32>
    %24 = arith.addf %18, %23 : vector<8x128xf32>
    %25 = vector.extract_strided_slice %0 {offsets = [3, 0], sizes = [1, 128], strides = [1, 1]} : vector<8x128xf32> to vector<1x128xf32>
    %26 = arith.index_cast %5 : i32 to index
    %c384 = arith.constant 384 : index
    %27 = vector.load %arg1[%26, %c384] : memref<8x1024xf32, #tpu.memory_space<vmem>>, vector<8x128xf32>
    %28 = vector.broadcast %25 : vector<1x128xf32> to vector<8x128xf32>
    %29 = arith.mulf %28, %27 : vector<8x128xf32>
    %30 = arith.addf %24, %29 : vector<8x128xf32>
    %31 = vector.extract_strided_slice %0 {offsets = [4, 0], sizes = [1, 128], strides = [1, 1]} : vector<8x128xf32> to vector<1x128xf32>
    %32 = arith.index_cast %5 : i32 to index
    %c512 = arith.constant 512 : index
    %33 = vector.load %arg1[%32, %c512] : memref<8x1024xf32, #tpu.memory_space<vmem>>, vector<8x128xf32>
    %34 = vector.broadcast %31 : vector<1x128xf32> to vector<8x128xf32>
    %35 = arith.mulf %34, %33 : vector<8x128xf32>
    %36 = arith.addf %30, %35 : vector<8x128xf32>
    %37 = vector.extract_strided_slice %0 {offsets = [0, 0], sizes = [1, 128], strides = [1, 1]} : vector<8x128xf32> to vector<1x128xf32>
    %38 = arith.index_cast %5 : i32 to index
    %c256_3 = arith.constant 256 : index
    %39 = vector.load %arg1[%38, %c256_3] : memref<8x1024xf32, #tpu.memory_space<vmem>>, vector<8x128xf32>
    %40 = vector.broadcast %37 : vector<1x128xf32> to vector<8x128xf32>
    %41 = arith.mulf %40, %39 : vector<8x128xf32>
    %42 = vector.broadcast %1 : vector<1x128xf32> to vector<8x128xf32>
    %43 = arith.addf %42, %41 : vector<8x128xf32>
    %44 = vector.extract_strided_slice %0 {offsets = [1, 0], sizes = [1, 128], strides = [1, 1]} : vector<8x128xf32> to vector<1x128xf32>
    %45 = arith.index_cast %5 : i32 to index
    %c384_4 = arith.constant 384 : index
    %46 = vector.load %arg1[%45, %c384_4] : memref<8x1024xf32, #tpu.memory_space<vmem>>, vector<8x128xf32>
    %47 = vector.broadcast %44 : vector<1x128xf32> to vector<8x128xf32>
    %48 = arith.mulf %47, %46 : vector<8x128xf32>
    %49 = arith.addf %43, %48 : vector<8x128xf32>
    %50 = vector.extract_strided_slice %0 {offsets = [2, 0], sizes = [1, 128], strides = [1, 1]} : vector<8x128xf32> to vector<1x128xf32>
    %51 = arith.index_cast %5 : i32 to index
    %c512_5 = arith.constant 512 : index
    %52 = vector.load %arg1[%51, %c512_5] : memref<8x1024xf32, #tpu.memory_space<vmem>>, vector<8x128xf32>
    %53 = vector.broadcast %50 : vector<1x128xf32> to vector<8x128xf32>
    %54 = arith.mulf %53, %52 : vector<8x128xf32>
    %55 = arith.addf %49, %54 : vector<8x128xf32>
    %56 = vector.extract_strided_slice %0 {offsets = [3, 0], sizes = [1, 128], strides = [1, 1]} : vector<8x128xf32> to vector<1x128xf32>
    %57 = arith.index_cast %5 : i32 to index
    %c640 = arith.constant 640 : index
    %58 = vector.load %arg1[%57, %c640] : memref<8x1024xf32, #tpu.memory_space<vmem>>, vector<8x128xf32>
    %59 = vector.broadcast %56 : vector<1x128xf32> to vector<8x128xf32>
    %60 = arith.mulf %59, %58 : vector<8x128xf32>
    %61 = arith.addf %55, %60 : vector<8x128xf32>
    %62 = vector.extract_strided_slice %0 {offsets = [4, 0], sizes = [1, 128], strides = [1, 1]} : vector<8x128xf32> to vector<1x128xf32>
    %63 = arith.index_cast %5 : i32 to index
    %c768 = arith.constant 768 : index
    %64 = vector.load %arg1[%63, %c768] : memref<8x1024xf32, #tpu.memory_space<vmem>>, vector<8x128xf32>
    %65 = vector.broadcast %62 : vector<1x128xf32> to vector<8x128xf32>
    %66 = arith.mulf %65, %64 : vector<8x128xf32>
    %67 = arith.addf %61, %66 : vector<8x128xf32>
    %cst = arith.constant 0.000000e+00 : f32
    %68 = vector.broadcast %cst : f32 to vector<8x128xf32>
    %69 = arith.maximumf %36, %68 : vector<8x128xf32>
    %70 = arith.truncf %69 : vector<8x128xf32> to vector<8x128xbf16>
    %cst_6 = arith.constant 0.000000e+00 : f32
    %71 = vector.broadcast %cst_6 : f32 to vector<8x128xf32>
    %72 = arith.maximumf %67, %71 : vector<8x128xf32>
    %73 = arith.truncf %72 : vector<8x128xf32> to vector<8x128xbf16>
    %c0_7 = arith.constant 0 : index
    %c0_8 = arith.constant 0 : index
    %74 = vector.load %arg3[%c0_7, %c0_8] : memref<128x256xbf16, #tpu.memory_space<vmem>>, vector<128x256xbf16>
    %cst_9 = arith.constant dense<0.000000e+00> : vector<8x256xf32>
    %75 = tpu.matmul %70, %74, %cst_9 {dimension_numbers = #tpu.dot_dimension_numbers<[1], [0], [0], [1], [0, 0, 1, 1], [], []>} : vector<8x128xbf16>, vector<128x256xbf16>, vector<8x256xf32> -> vector<8x256xf32>
    %c0_10 = arith.constant 0 : index
    %c0_11 = arith.constant 0 : index
    %76 = vector.load %arg4[%c0_10, %c0_11] : memref<128x256xbf16, #tpu.memory_space<vmem>>, vector<128x256xbf16>
    %cst_12 = arith.constant dense<0.000000e+00> : vector<8x256xf32>
    %77 = tpu.matmul %73, %76, %cst_12 {dimension_numbers = #tpu.dot_dimension_numbers<[1], [0], [0], [1], [0, 0, 1, 1], [], []>} : vector<8x128xbf16>, vector<128x256xbf16>, vector<8x256xf32> -> vector<8x256xf32>
    %78 = arith.addf %75, %77 : vector<8x256xf32>
    %c0_13 = arith.constant 0 : index
    %c0_14 = arith.constant 0 : index
    %79 = vector.load %arg5[%c0_13, %c0_14] : memref<1x256xf32, #tpu.memory_space<vmem>>, vector<1x256xf32>
    %80 = vector.broadcast %79 : vector<1x256xf32> to vector<8x256xf32>
    %81 = arith.addf %78, %80 : vector<8x256xf32>
    %cst_15 = arith.constant 0.000000e+00 : f32
    %82 = vector.broadcast %cst_15 : f32 to vector<8x256xf32>
    %83 = arith.maximumf %81, %82 : vector<8x256xf32>
    %84 = arith.truncf %83 : vector<8x256xf32> to vector<8x256xbf16>
    %85 = arith.index_cast %5 : i32 to index
    %c896 = arith.constant 896 : index
    %86 = vector.load %arg1[%85, %c896] : memref<8x1024xf32, #tpu.memory_space<vmem>>, vector<8x128xf32>
    %87 = arith.truncf %86 : vector<8x128xf32> to vector<8x128xbf16>
    %88 = tpu.concatenate %84, %87 in 1 : vector<8x256xbf16>, vector<8x128xbf16> -> vector<8x384xbf16>
    %c0_16 = arith.constant 0 : index
    %c0_17 = arith.constant 0 : index
    %89 = vector.load %arg6[%c0_16, %c0_17] : memref<384x32xbf16, #tpu.memory_space<vmem>>, vector<384x32xbf16>
    %cst_18 = arith.constant dense<0.000000e+00> : vector<8x32xf32>
    %90 = tpu.matmul %88, %89, %cst_18 {dimension_numbers = #tpu.dot_dimension_numbers<[1], [0], [0], [1], [0, 0, 1, 1], [], []>} : vector<8x384xbf16>, vector<384x32xbf16>, vector<8x32xf32> -> vector<8x32xf32>
    %c0_19 = arith.constant 0 : index
    %c0_20 = arith.constant 0 : index
    %91 = vector.load %arg7[%c0_19, %c0_20] : memref<1x32xf32, #tpu.memory_space<vmem>>, vector<1x32xf32>
    %92 = vector.broadcast %91 : vector<1x32xf32> to vector<8x32xf32>
    %93 = arith.addf %90, %92 : vector<8x32xf32>
    %cst_21 = arith.constant 0.000000e+00 : f32
    %94 = vector.broadcast %cst_21 : f32 to vector<8x32xf32>
    %95 = arith.maximumf %93, %94 : vector<8x32xf32>
    %96 = arith.truncf %95 : vector<8x32xf32> to vector<8x32xbf16>
    %c0_22 = arith.constant 0 : index
    %c0_23 = arith.constant 0 : index
    %97 = vector.load %arg8[%c0_22, %c0_23] : memref<32x128xbf16, #tpu.memory_space<vmem>>, vector<32x128xbf16>
    %cst_24 = arith.constant dense<0.000000e+00> : vector<8x128xf32>
    %98 = tpu.matmul %96, %97, %cst_24 {dimension_numbers = #tpu.dot_dimension_numbers<[1], [0], [0], [1], [0, 0, 1, 1], [], []>} : vector<8x32xbf16>, vector<32x128xbf16>, vector<8x128xf32> -> vector<8x128xf32>
    %c0_25 = arith.constant 0 : index
    %c0_26 = arith.constant 0 : index
    %99 = vector.load %arg9[%c0_25, %c0_26] : memref<1x128xf32, #tpu.memory_space<vmem>>, vector<1x128xf32>
    %100 = vector.broadcast %99 : vector<1x128xf32> to vector<8x128xf32>
    %101 = arith.addf %98, %100 : vector<8x128xf32>
    %cst_27 = arith.constant 5.000000e-01 : f32
    %102 = vector.broadcast %cst_27 : f32 to vector<8x128xf32>
    %103 = arith.mulf %102, %101 : vector<8x128xf32>
    %104 = math.tanh %103 : vector<8x128xf32>
    %cst_28 = arith.constant 1.000000e+00 : f32
    %105 = vector.broadcast %cst_28 : f32 to vector<8x128xf32>
    %106 = arith.addf %104, %105 : vector<8x128xf32>
    %cst_29 = arith.constant 5.000000e-01 : f32
    %107 = vector.broadcast %cst_29 : f32 to vector<8x128xf32>
    %108 = arith.mulf %107, %106 : vector<8x128xf32>
    %109 = arith.index_cast %5 : i32 to index
    %c0_30 = arith.constant 0 : index
    %110 = vector.load %arg10[%109, %c0_30] : memref<8x128xf32, #tpu.memory_space<vmem>>, vector<8x128xf32>
    tpu.vector_store %arg10[%109, %c0_30], %108 {strides = array<i32>} : memref<8x128xf32, #tpu.memory_space<vmem>>, vector<8x128xf32>,
    %c1_i32_31 = arith.constant 1 : i32
    return
  }
  func.func @transform_0(%arg0: i32) -> (i32, i32) {
    %c0_i32 = arith.constant 0 : i32
    %c0_i32_0 = arith.constant 0 : i32
    return %arg0, %c0_i32 : i32, i32
  }
  func.func @transform_1(%arg0: i32) -> (i32, i32) {
    %c0_i32 = arith.constant 0 : i32
    %c0_i32_0 = arith.constant 0 : i32
    %c0_i32_1 = arith.constant 0 : i32
    return %c0_i32, %c0_i32_0 : i32, i32
  }
  func.func @transform_2(%arg0: i32) -> (i32, i32) {
    %c0_i32 = arith.constant 0 : i32
    %c0_i32_0 = arith.constant 0 : i32
    %c0_i32_1 = arith.constant 0 : i32
    return %c0_i32, %c0_i32_0 : i32, i32
  }
  func.func @transform_3(%arg0: i32) -> (i32, i32) {
    %c0_i32 = arith.constant 0 : i32
    %c0_i32_0 = arith.constant 0 : i32
    %c0_i32_1 = arith.constant 0 : i32
    return %c0_i32, %c0_i32_0 : i32, i32
  }
  func.func @transform_4(%arg0: i32) -> (i32, i32) {
    %c0_i32 = arith.constant 0 : i32
    %c0_i32_0 = arith.constant 0 : i32
    %c0_i32_1 = arith.constant 0 : i32
    return %c0_i32, %c0_i32_0 : i32, i32
  }
  func.func @transform_5(%arg0: i32) -> (i32, i32) {
    %c0_i32 = arith.constant 0 : i32
    %c0_i32_0 = arith.constant 0 : i32
    %c0_i32_1 = arith.constant 0 : i32
    return %c0_i32, %c0_i32_0 : i32, i32
  }
  func.func @transform_6(%arg0: i32) -> (i32, i32) {
    %c0_i32 = arith.constant 0 : i32
    %c0_i32_0 = arith.constant 0 : i32
    %c0_i32_1 = arith.constant 0 : i32
    return %c0_i32, %c0_i32_0 : i32, i32
  }
  func.func @transform_7(%arg0: i32) -> (i32, i32) {
    %c0_i32 = arith.constant 0 : i32
    %c0_i32_0 = arith.constant 0 : i32
    %c0_i32_1 = arith.constant 0 : i32
    return %c0_i32, %c0_i32_0 : i32, i32
  }
  func.func @transform_8(%arg0: i32) -> (i32, i32) {
    %c0_i32 = arith.constant 0 : i32
    %c0_i32_0 = arith.constant 0 : i32
    %c0_i32_1 = arith.constant 0 : i32
    return %c0_i32, %c0_i32_0 : i32, i32
  }
  func.func @transform_9(%arg0: i32) -> (i32, i32) {
    %c0_i32 = arith.constant 0 : i32
    %c0_i32_0 = arith.constant 0 : i32
    return %arg0, %c0_i32 : i32, i32
  }
}

</mosaic_0001>

<llo_original>
// kernel: tpu_custom_call.1
$region0: #{tpu_custom_call.1}
  #allocation0 [shape = 'u32[]', space=smem, size = 0x4, offset = 0x4, fixed_abs, tag = 'smem constant byte address 0x4 - core index']
  #allocation1 [shape = 'u32[144,128]{1,0:T(1,128)}', space=vmem, size = 0x12000, scoped, tag = 'internal scratch']
  %s0 = inlined_call_operand.vmem [shape: f32[8,1024], index: 0, kind: input, shape index: {}]
  %s1 = inlined_call_operand.vmem [shape: f32[8,128], index: 1, kind: input, shape index: {}]
  %s2 = inlined_call_operand.vmem [shape: bf16[128,256], index: 2, kind: input, shape index: {}]
  %s3 = inlined_call_operand.hbm [shape: bf16[128,256], index: 3, kind: input, shape index: {}]
  %s4 = inlined_call_operand.vmem [shape: f32[1,256], index: 4, kind: input, shape index: {}]
  %s5 = inlined_call_operand.vmem [shape: bf16[384,32], index: 5, kind: input, shape index: {}]
  %s6 = inlined_call_operand.vmem [shape: f32[1,32], index: 6, kind: input, shape index: {}]
  %s7 = inlined_call_operand.vmem [shape: bf16[32,128], index: 7, kind: input, shape index: {}]
  %s8 = inlined_call_operand.vmem [shape: f32[1,128], index: 8, kind: input, shape index: {}]
  %s9 = inlined_call_operand.hbm [shape: f32[8,128], index: 9, kind: output, shape index: {}]
  %s10 = sld [smem:[#allocation0]]
  $region50: #{tpu_custom_call.1} parent=0
    _
  %s12 = ssub.s32 1, %s10
  %s13 = scalar_select 0, %s12, %s10
  $region1: #{tpu_custom_call.1} parent=0
    #allocation2 [shape = 'u8[65536]{0}', space=vmem, size = 0x10000, scoped, tag = 'input window, operand 3, single buffered']
    #allocation3 [shape = 's32[1]{0}', space=sflag, size = 0x4, scoped, tag = 'scoped memory for tpu_custom_call.1']
    #allocation4 [shape = 's32[1]{0}', space=sflag, size = 0x4, scoped, tag = 'scoped memory for tpu_custom_call.1']
    #allocation5 [shape = 'u8[4096]{0}', space=vmem, size = 0x1000, scoped, tag = 'output window, operand 0, single buffered']
    %14 = vsyncpa [#allocation3], 0
    %15 = vsyncpa [#allocation4], 0
    // Predicated region
    $region2: #{tpu_custom_call.1} parent=1 // pred_check
      _
    $region3: #{tpu_custom_call.1} parent=1 // pred_check_branch
      %17 = sbr.rel (0) target = $region5
    $region4: #{tpu_custom_call.1} parent=1 // pred_region
      _
    $region5: #{tpu_custom_call.1} parent=1 // pred_fallthru
      _
    // Predicated region
    $region6: #{tpu_custom_call.1} parent=1 // pred_check
      _
    $region7: #{tpu_custom_call.1} parent=1 // pred_check_branch
      %19 = sbr.rel (0) target = $region9
    $region8: #{tpu_custom_call.1} parent=1 // pred_region
      _
    $region9: #{tpu_custom_call.1} parent=1 // pred_fallthru
      _
    // Predicated region
    $region10: #{tpu_custom_call.1} parent=1 // pred_check
      _
    $region11: #{tpu_custom_call.1} parent=1 // pred_check_branch
      %21 = sbr.rel (0) target = $region13
    $region12: #{tpu_custom_call.1} parent=1 // pred_region
      _
    $region13: #{tpu_custom_call.1} parent=1 // pred_fallthru
      _
    // Predicated region
    $region14: #{tpu_custom_call.1} parent=1 // pred_check
      _
    $region15: #{tpu_custom_call.1} parent=1 // pred_check_branch
      %23 = sbr.rel (0) target = $region17
    $region16: #{tpu_custom_call.1} parent=1 // pred_region
      %s25 = ssub.s32 2048, 2048
      %26 = vsyncadd [#allocation3], %s25
      %s27 = sshll.u32 [#allocation2], 4
      %s28 = int_to_ptr.vmem [resolvable:$true] %s27
      %33 = dma.hbm_to_vmem [thread:$0]  %s3, 2048, %s28, [#allocation3], 128, 128, 8
    $region17: #{tpu_custom_call.1} parent=1 // pred_fallthru
      _
    // Predicated region
    $region18: #{tpu_custom_call.1} parent=1 // pred_check
      _
    $region19: #{tpu_custom_call.1} parent=1 // pred_check_branch
      %35 = sbr.rel (0) target = $region21
    $region20: #{tpu_custom_call.1} parent=1 // pred_region
      _
    $region21: #{tpu_custom_call.1} parent=1 // pred_fallthru
      _
    // Predicated region
    $region22: #{tpu_custom_call.1} parent=1 // pred_check
      _
    $region23: #{tpu_custom_call.1} parent=1 // pred_check_branch
      %37 = sbr.rel (0) target = $region25
    $region24: #{tpu_custom_call.1} parent=1 // pred_region
      _
    $region25: #{tpu_custom_call.1} parent=1 // pred_fallthru
      _
    // Predicated region
    $region26: #{tpu_custom_call.1} parent=1 // pred_check
      _
    $region27: #{tpu_custom_call.1} parent=1 // pred_check_branch
      %39 = sbr.rel (0) target = $region29
    $region28: #{tpu_custom_call.1} parent=1 // pred_region
      _
    $region29: #{tpu_custom_call.1} parent=1 // pred_fallthru
      _
    // Predicated region
    $region30: #{tpu_custom_call.1} parent=1 // pred_check
      _
    $region31: #{tpu_custom_call.1} parent=1 // pred_check_branch
      %41 = sbr.rel (0) target = $region33
    $region32: #{tpu_custom_call.1} parent=1 // pred_region
      _
    $region33: #{tpu_custom_call.1} parent=1 // pred_fallthru
      _
    // Predicated region
    $region34: #{tpu_custom_call.1} parent=1 // pred_check
      _
    $region35: #{tpu_custom_call.1} parent=1 // pred_check_branch
      %43 = sbr.rel (0) target = $region37
    $region36: #{tpu_custom_call.1} parent=1 // pred_region
      _
    $region37: #{tpu_custom_call.1} parent=1 // pred_fallthru
      _
    // Predicated region
    $region38: #{tpu_custom_call.1} parent=1 // pred_check
      _
    $region39: #{tpu_custom_call.1} parent=1 // pred_check_branch
      %45 = sbr.rel (0) target = $region41
    $region40: #{tpu_custom_call.1} parent=1 // pred_region
      %46 = dma.done [#allocation3], 2048
    $region41: #{tpu_custom_call.1} parent=1 // pred_fallthru
      _
    %v48 = vld [vmem:[%s1] sm:$0xff]
    %s49 = smul.u32 0, 8
    %s50 = smul.addr %s49, 8
    %s51 = scalar_lea.vmem %s0, %s50
    %v52 = vld [vmem:[%s51] sm:$0xff]
    %v53 = vlaneseq
    %v54 = vshrl.u32 %v53, 7
    %v55 = vsub.s32 0, %v54
    %v56 = vrot.slane %v48, %v55
    %v57 = vmul.f32 %v56, %v52
    %v58 = vlaneseq
    %v59 = vshrl.u32 %v58, 7
    %v60 = vsub.s32 5, %v59
    %v61 = vrot.slane %v48, %v60
    %v62 = vadd.f32 %v61, %v57
    %v63 = vld [vmem:[%s51 + $0x8] sm:$0xff]
    %v64 = vlaneseq
    %v65 = vshrl.u32 %v64, 7
    %v66 = vsub.s32 1, %v65
    %v67 = vrot.slane %v48, %v66
    %v68 = vmul.f32 %v67, %v63
    %v69 = vadd.f32 %v62, %v68
    %v70 = vld [vmem:[%s51 + $0x10] sm:$0xff]
    %v71 = vlaneseq
    %v72 = vshrl.u32 %v71, 7
    %v73 = vsub.s32 2, %v72
    %v74 = vrot.slane %v48, %v73
    %v75 = vmul.f32 %v74, %v70
    %v76 = vadd.f32 %v69, %v75
    %v77 = vld [vmem:[%s51 + $0x18] sm:$0xff]
    %v78 = vlaneseq
    %v79 = vshrl.u32 %v78, 7
    %v80 = vsub.s32 3, %v79
    %v81 = vrot.slane %v48, %v80
    %v82 = vmul.f32 %v81, %v77
    %v83 = vadd.f32 %v76, %v82
    %v84 = vld [vmem:[%s51 + $0x20] sm:$0xff]
    %v85 = vlaneseq
    %v86 = vshrl.u32 %v85, 7
    %v87 = vsub.s32 4, %v86
    %v88 = vrot.slane %v48, %v87
    %v89 = vmul.f32 %v88, %v84
    %v90 = vadd.f32 %v83, %v89
    %v91 = vmul.f32 %v56, %v70
    %v92 = vadd.f32 %v61, %v91
    %v93 = vmul.f32 %v67, %v77
    %v94 = vadd.f32 %v92, %v93
    %v95 = vmul.f32 %v74, %v84
    %v96 = vadd.f32 %v94, %v95
    %v97 = vld [vmem:[%s51 + $0x28] sm:$0xff]
    %v98 = vmul.f32 %v81, %v97
    %v99 = vadd.f32 %v96, %v98
    %v100 = vld [vmem:[%s51 + $0x30] sm:$0xff]
    %v101 = vmul.f32 %v88, %v100
    %v102 = vadd.f32 %v99, %v101
    %v103 = vmax.f32 %v90, 0.0
    %v104 = vpack.c.bf16 %v103, %v103
    %v105 = vmax.f32 %v102, 0.0
    %v106 = vpack.c.bf16 %v105, %v105
    %v107 = vld [vmem:[%s2] sm:$0xff]
    %v108 = vld [vmem:[%s2 + $0x8] sm:$0xff]
    %v109 = vld [vmem:[%s2 + $0x10] sm:$0xff]
    %v110 = vld [vmem:[%s2 + $0x18] sm:$0xff]
    %v111 = vld [vmem:[%s2 + $0x20] sm:$0xff]
    %v112 = vld [vmem:[%s2 + $0x28] sm:$0xff]
    %v113 = vld [vmem:[%s2 + $0x30] sm:$0xff]
    %v114 = vld [vmem:[%s2 + $0x38] sm:$0xff]
    %v115 = vld [vmem:[%s2 + $0x40] sm:$0xff]
    %v116 = vld [vmem:[%s2 + $0x48] sm:$0xff]
    %v117 = vld [vmem:[%s2 + $0x50] sm:$0xff]
    %v118 = vld [vmem:[%s2 + $0x58] sm:$0xff]
    %v119 = vld [vmem:[%s2 + $0x60] sm:$0xff]
    %v120 = vld [vmem:[%s2 + $0x68] sm:$0xff]
    %v121 = vld [vmem:[%s2 + $0x70] sm:$0xff]
    %v122 = vld [vmem:[%s2 + $0x78] sm:$0xff]
    %v123 = vld [vmem:[#allocation2] sm:$0xff]
    %v124 = vld [vmem:[#allocation2 + $0x8] sm:$0xff]
    %v125 = vld [vmem:[#allocation2 + $0x10] sm:$0xff]
    %v126 = vld [vmem:[#allocation2 + $0x18] sm:$0xff]
    %v127 = vld [vmem:[#allocation2 + $0x20] sm:$0xff]
    %v128 = vld [vmem:[#allocation2 + $0x28] sm:$0xff]
    %v129 = vld [vmem:[#allocation2 + $0x30] sm:$0xff]
    %v130 = vld [vmem:[#allocation2 + $0x38] sm:$0xff]
    %v131 = vld [vmem:[#allocation2 + $0x40] sm:$0xff]
    %v132 = vld [vmem:[#allocation2 + $0x48] sm:$0xff]
    %v133 = vld [vmem:[#allocation2 + $0x50] sm:$0xff]
    %v134 = vld [vmem:[#allocation2 + $0x58] sm:$0xff]
    %v135 = vld [vmem:[#allocation2 + $0x60] sm:$0xff]
    %v136 = vld [vmem:[#allocation2 + $0x68] sm:$0xff]
    %v137 = vld [vmem:[#allocation2 + $0x70] sm:$0xff]
    %v138 = vld [vmem:[#allocation2 + $0x78] sm:$0xff]
    %v155 = vunpack.c.l.b16 %v123
    %v156 = vunpack.c.h.b16 %v123
    %v157 = vunpack.c.l.b16 %v124
    %v158 = vunpack.c.h.b16 %v124
    %v159 = vunpack.c.l.b16 %v125
    %v160 = vunpack.c.h.b16 %v125
    %v161 = vunpack.c.l.b16 %v126
    %v162 = vunpack.c.h.b16 %v126
    %v163 = vunpack.c.l.b16 %v127
    %v164 = vunpack.c.h.b16 %v127
    %v165 = vunpack.c.l.b16 %v128
    %v166 = vunpack.c.h.b16 %v128
    %v167 = vunpack.c.l.b16 %v129
    %v168 = vunpack.c.h.b16 %v129
    %v169 = vunpack.c.l.b16 %v130
    %v170 = vunpack.c.h.b16 %v130
    %v171 = vunpack.c.l.b16 %v131
    %v172 = vunpack.c.h.b16 %v131
    %v173 = vunpack.c.l.b16 %v132
    %v174 = vunpack.c.h.b16 %v132
    %v175 = vunpack.c.l.b16 %v133
    %v176 = vunpack.c.h.b16 %v133
    %v177 = vunpack.c.l.b16 %v134
    %v178 = vunpack.c.h.b16 %v134
    %v179 = vunpack.c.l.b16 %v135
    %v180 = vunpack.c.h.b16 %v135
    %v181 = vunpack.c.l.b16 %v136
    %v182 = vunpack.c.h.b16 %v136
    %v183 = vunpack.c.l.b16 %v137
    %v184 = vunpack.c.h.b16 %v137
    %v185 = vunpack.c.l.b16 %v138
    %v186 = vunpack.c.h.b16 %v138
    %v187 = vpack.c.b16 %v157, %v155
    %v188 = vpack.c.b16 %v158, %v156
    %v189 = vpack.c.b16 %v161, %v159
    %v190 = vpack.c.b16 %v162, %v160
    %v191 = vpack.c.b16 %v165, %v163
    %v192 = vpack.c.b16 %v166, %v164
    %v193 = vpack.c.b16 %v169, %v167
    %v194 = vpack.c.b16 %v170, %v168
    %v195 = vpack.c.b16 %v173, %v171
    %v196 = vpack.c.b16 %v174, %v172
    %v197 = vpack.c.b16 %v177, %v175
    %v198 = vpack.c.b16 %v178, %v176
    %v199 = vpack.c.b16 %v181, %v179
    %v200 = vpack.c.b16 %v182, %v180
    %v201 = vpack.c.b16 %v185, %v183
    %v202 = vpack.c.b16 %v186, %v184
    %219 = vmatprep.subr.bf16.mxu0 %v188
    %220 = vmatpush1.bf16.msra.mxu0 %v187
    %221 = vmatprep.subr.bf16.mxu0 %v190
    %222 = vmatpush1.bf16.msra.mxu0 %v189
    %223 = vmatprep.subr.bf16.mxu0 %v192
    %224 = vmatpush1.bf16.msra.mxu0 %v191
    %225 = vmatprep.subr.bf16.mxu0 %v194
    %226 = vmatpush1.bf16.msra.mxu0 %v193
    %227 = vmatprep.subr.bf16.mxu0 %v196
    %228 = vmatpush1.bf16.msra.mxu0 %v195
    %229 = vmatprep.subr.bf16.mxu0 %v198
    %230 = vmatpush1.bf16.msra.mxu0 %v197
    %231 = vmatprep.subr.bf16.mxu0 %v200
    %232 = vmatpush1.bf16.msra.mxu0 %v199
    %233 = vmatprep.subr.bf16.mxu0 %v202
    %234 = vmatpush1.bf16.msra.mxu0 %v201
    %235 = vmatprep.subr.bf16.mxu0 0
    %236 = vmatpush1.bf16.msra.mxu0 0
    %237 = vmatprep.subr.bf16.mxu0 0
    %238 = vmatpush1.bf16.msra.mxu0 0
    %239 = vmatprep.subr.bf16.mxu0 0
    %240 = vmatpush1.bf16.msra.mxu0 0
    %241 = vmatprep.subr.bf16.mxu0 0
    %242 = vmatpush1.bf16.msra.mxu0 0
    %243 = vmatprep.subr.bf16.mxu0 0
    %244 = vmatpush1.bf16.msra.mxu0 0
    %245 = vmatprep.subr.bf16.mxu0 0
    %246 = vmatpush1.bf16.msra.mxu0 0
    %247 = vmatprep.subr.bf16.mxu0 0
    %248 = vmatpush1.bf16.msra.mxu0 0
    %249 = vmatprep.subr.bf16.mxu0 0
    %250 = vmatpush1.bf16.msra.mxu0 0
    %251 = vmatprep.mubr.bf16.mxu0 0
    %252 = vmatmul.mubr.bf16.gmra.mrb[0].mxu0 %v106
    %v253 = vpop.f32.mrb[0].mxu0
    %v254 = vadd.f32 0.0, %v253
    %v255 = vpop.f32.mrb[0].mxu0
    %v256 = vadd.f32 0.0, %v255
    %v257 = vpop.f32.mrb[0].mxu0
    %v258 = vpop.f32.mrb[0].mxu0
    %259 = vdwg.mxu0
    %v276 = vunpack.c.l.b16 %v107
    %v277 = vunpack.c.h.b16 %v107
    %v278 = vunpack.c.l.b16 %v108
    %v279 = vunpack.c.h.b16 %v108
    %v280 = vunpack.c.l.b16 %v109
    %v281 = vunpack.c.h.b16 %v109
    %v282 = vunpack.c.l.b16 %v110
    %v283 = vunpack.c.h.b16 %v110
    %v284 = vunpack.c.l.b16 %v111
    %v285 = vunpack.c.h.b16 %v111
    %v286 = vunpack.c.l.b16 %v112
    %v287 = vunpack.c.h.b16 %v112
    %v288 = vunpack.c.l.b16 %v113
    %v289 = vunpack.c.h.b16 %v113
    %v290 = vunpack.c.l.b16 %v114
    %v291 = vunpack.c.h.b16 %v114
    %v292 = vunpack.c.l.b16 %v115
    %v293 = vunpack.c.h.b16 %v115
    %v294 = vunpack.c.l.b16 %v116
    %v295 = vunpack.c.h.b16 %v116
    %v296 = vunpack.c.l.b16 %v117
    %v297 = vunpack.c.h.b16 %v117
    %v298 = vunpack.c.l.b16 %v118
    %v299 = vunpack.c.h.b16 %v118
    %v300 = vunpack.c.l.b16 %v119
    %v301 = vunpack.c.h.b16 %v119
    %v302 = vunpack.c.l.b16 %v120
    %v303 = vunpack.c.h.b16 %v120
    %v304 = vunpack.c.l.b16 %v121
    %v305 = vunpack.c.h.b16 %v121
    %v306 = vunpack.c.l.b16 %v122
    %v307 = vunpack.c.h.b16 %v122
    %v308 = vpack.c.b16 %v278, %v276
    %v309 = vpack.c.b16 %v279, %v277
    %v310 = vpack.c.b16 %v282, %v280
    %v311 = vpack.c.b16 %v283, %v281
    %v312 = vpack.c.b16 %v286, %v284
    %v313 = vpack.c.b16 %v287, %v285
    %v314 = vpack.c.b16 %v290, %v288
    %v315 = vpack.c.b16 %v291, %v289
    %v316 = vpack.c.b16 %v294, %v292
    %v317 = vpack.c.b16 %v295, %v293
    %v318 = vpack.c.b16 %v298, %v296
    %v319 = vpack.c.b16 %v299, %v297
    %v320 = vpack.c.b16 %v302, %v300
    %v321 = vpack.c.b16 %v303, %v301
    %v322 = vpack.c.b16 %v306, %v304
    %v323 = vpack.c.b16 %v307, %v305
    %340 = vmatprep.subr.bf16.mxu0 %v309
    %341 = vmatpush1.bf16.msra.mxu0 %v308
    %342 = vmatprep.subr.bf16.mxu0 %v311
    %343 = vmatpush1.bf16.msra.mxu0 %v310
    %344 = vmatprep.subr.bf16.mxu0 %v313
    %345 = vmatpush1.bf16.msra.mxu0 %v312
    %346 = vmatprep.subr.bf16.mxu0 %v315
    %347 = vmatpush1.bf16.msra.mxu0 %v314
    %348 = vmatprep.subr.bf16.mxu0 %v317
    %349 = vmatpush1.bf16.msra.mxu0 %v316
    %350 = vmatprep.subr.bf16.mxu0 %v319
    %351 = vmatpush1.bf16.msra.mxu0 %v318
    %352 = vmatprep.subr.bf16.mxu0 %v321
    %353 = vmatpush1.bf16.msra.mxu0 %v320
    %354 = vmatprep.subr.bf16.mxu0 %v323
    %355 = vmatpush1.bf16.msra.mxu0 %v322
    %356 = vmatprep.subr.bf16.mxu0 0
    %357 = vmatpush1.bf16.msra.mxu0 0
    %358 = vmatprep.subr.bf16.mxu0 0
    %359 = vmatpush1.bf16.msra.mxu0 0
    %360 = vmatprep.subr.bf16.mxu0 0
    %361 = vmatpush1.bf16.msra.mxu0 0
    %362 = vmatprep.subr.bf16.mxu0 0
    %363 = vmatpush1.bf16.msra.mxu0 0
    %364 = vmatprep.subr.bf16.mxu0 0
    %365 = vmatpush1.bf16.msra.mxu0 0
    %366 = vmatprep.subr.bf16.mxu0 0
    %367 = vmatpush1.bf16.msra.mxu0 0
    %368 = vmatprep.subr.bf16.mxu0 0
    %369 = vmatpush1.bf16.msra.mxu0 0
    %370 = vmatprep.subr.bf16.mxu0 0
    %371 = vmatpush1.bf16.msra.mxu0 0
    %372 = vmatprep.mubr.bf16.mxu0 0
    %373 = vmatmul.mubr.bf16.gmra.mrb[0].mxu0 %v104
    %v374 = vpop.f32.mrb[0].mxu0
    %v375 = vadd.f32 %v254, %v374
    %v376 = vpop.f32.mrb[0].mxu0
    %v377 = vadd.f32 %v256, %v376
    %v378 = vpop.f32.mrb[0].mxu0
    %v379 = vpop.f32.mrb[0].mxu0
    %380 = vdwg.mxu0
    %v381 = vld [vmem:[%s4] sm:$0x3]
    %v383 = vlaneseq
    %v384 = vshrl.u32 %v383, 7
    %v385 = vsub.s32 0, %v384
    %v386 = vrot.slane %v381, %v385
    %v387 = vlaneseq
    %v388 = vshrl.u32 %v387, 7
    %v389 = vsub.s32 1, %v388
    %v390 = vrot.slane %v381, %v389
    %v393 = vadd.f32 %v375, %v386
    %v394 = vadd.f32 %v377, %v390
    %v395 = vmax.f32 %v393, 0.0
    %v396 = vmax.f32 %v394, 0.0
    %v397 = vpack.c.bf16 %v395, %v395
    %v398 = vpack.c.bf16 %v396, %v396
    %v399 = vld [vmem:[%s51 + $0x38] sm:$0xff]
    %v400 = vpack.c.bf16 %v399, %v399
    %v401 = vld [vmem:[%s5] sm:$0xf]
    %v402 = vld [vmem:[%s5 + $0x4] sm:$0xf]
    %v403 = vld [vmem:[%s5 + $0x8] sm:$0xf]
    %v404 = vld [vmem:[%s5 + $0xc] sm:$0xf]
    %v405 = vld [vmem:[%s5 + $0x10] sm:$0xf]
    %v406 = vld [vmem:[%s5 + $0x14] sm:$0xf]
    %v407 = vld [vmem:[%s5 + $0x18] sm:$0xf]
    %v408 = vld [vmem:[%s5 + $0x1c] sm:$0xf]
    %v409 = vld [vmem:[%s5 + $0x20] sm:$0xf]
    %v410 = vld [vmem:[%s5 + $0x24] sm:$0xf]
    %v411 = vld [vmem:[%s5 + $0x28] sm:$0xf]
    %v412 = vld [vmem:[%s5 + $0x2c] sm:$0xf]
    %v413 = vld [vmem:[%s5 + $0x30] sm:$0xf]
    %v414 = vld [vmem:[%s5 + $0x34] sm:$0xf]
    %v415 = vld [vmem:[%s5 + $0x38] sm:$0xf]
    %v416 = vld [vmem:[%s5 + $0x3c] sm:$0xf]
    %v417 = vld [vmem:[%s5 + $0x40] sm:$0xf]
    %v418 = vld [vmem:[%s5 + $0x44] sm:$0xf]
    %v419 = vld [vmem:[%s5 + $0x48] sm:$0xf]
    %v420 = vld [vmem:[%s5 + $0x4c] sm:$0xf]
    %v421 = vld [vmem:[%s5 + $0x50] sm:$0xf]
    %v422 = vld [vmem:[%s5 + $0x54] sm:$0xf]
    %v423 = vld [vmem:[%s5 + $0x58] sm:$0xf]
    %v424 = vld [vmem:[%s5 + $0x5c] sm:$0xf]
    %v425 = vld [vmem:[%s5 + $0x60] sm:$0xf]
    %v426 = vld [vmem:[%s5 + $0x64] sm:$0xf]
    %v427 = vld [vmem:[%s5 + $0x68] sm:$0xf]
    %v428 = vld [vmem:[%s5 + $0x6c] sm:$0xf]
    %v429 = vld [vmem:[%s5 + $0x70] sm:$0xf]
    %v430 = vld [vmem:[%s5 + $0x74] sm:$0xf]
    %v431 = vld [vmem:[%s5 + $0x78] sm:$0xf]
    %v432 = vld [vmem:[%s5 + $0x7c] sm:$0xf]
    %v433 = vld [vmem:[%s5 + $0x80] sm:$0xf]
    %v434 = vld [vmem:[%s5 + $0x84] sm:$0xf]
    %v435 = vld [vmem:[%s5 + $0x88] sm:$0xf]
    %v436 = vld [vmem:[%s5 + $0x8c] sm:$0xf]
    %v437 = vld [vmem:[%s5 + $0x90] sm:$0xf]
    %v438 = vld [vmem:[%s5 + $0x94] sm:$0xf]
    %v439 = vld [vmem:[%s5 + $0x98] sm:$0xf]
    %v440 = vld [vmem:[%s5 + $0x9c] sm:$0xf]
    %v441 = vld [vmem:[%s5 + $0xa0] sm:$0xf]
    %v442 = vld [vmem:[%s5 + $0xa4] sm:$0xf]
    %v443 = vld [vmem:[%s5 + $0xa8] sm:$0xf]
    %v444 = vld [vmem:[%s5 + $0xac] sm:$0xf]
    %v445 = vld [vmem:[%s5 + $0xb0] sm:$0xf]
    %v446 = vld [vmem:[%s5 + $0xb4] sm:$0xf]
    %v447 = vld [vmem:[%s5 + $0xb8] sm:$0xf]
    %v448 = vld [vmem:[%s5 + $0xbc] sm:$0xf]
    %v449 = vld [vmem:[%s6] sm:$0x1]
    %v451 = vlaneseq
    %v452 = vshrl.u32 %v451, 7
    %v453 = vsub.s32 0, %v452
    %v454 = vrot.slane %v449, %v453
    %v504 = vunpack.c.l.b16 %v401
    %v505 = vunpack.c.l.b16 %v402
    %v506 = vunpack.c.l.b16 %v403
    %v507 = vunpack.c.l.b16 %v404
    %v508 = vunpack.c.l.b16 %v405
    %v509 = vunpack.c.l.b16 %v406
    %v510 = vunpack.c.l.b16 %v407
    %v511 = vunpack.c.l.b16 %v408
    %v512 = vunpack.c.l.b16 %v409
    %v513 = vunpack.c.l.b16 %v410
    %v514 = vunpack.c.l.b16 %v411
    %v515 = vunpack.c.l.b16 %v412
    %v516 = vunpack.c.l.b16 %v413
    %v517 = vunpack.c.l.b16 %v414
    %v518 = vunpack.c.l.b16 %v415
    %v519 = vunpack.c.l.b16 %v416
    %v520 = vunpack.c.l.b16 %v417
    %v521 = vunpack.c.l.b16 %v418
    %v522 = vunpack.c.l.b16 %v419
    %v523 = vunpack.c.l.b16 %v420
    %v524 = vunpack.c.l.b16 %v421
    %v525 = vunpack.c.l.b16 %v422
    %v526 = vunpack.c.l.b16 %v423
    %v527 = vunpack.c.l.b16 %v424
    %v528 = vunpack.c.l.b16 %v425
    %v529 = vunpack.c.l.b16 %v426
    %v530 = vunpack.c.l.b16 %v427
    %v531 = vunpack.c.l.b16 %v428
    %v532 = vunpack.c.l.b16 %v429
    %v533 = vunpack.c.l.b16 %v430
    %v534 = vunpack.c.l.b16 %v431
    %v535 = vunpack.c.l.b16 %v432
    %v536 = vunpack.c.l.b16 %v433
    %v537 = vunpack.c.l.b16 %v434
    %v538 = vunpack.c.l.b16 %v435
    %v539 = vunpack.c.l.b16 %v436
    %v540 = vunpack.c.l.b16 %v437
    %v541 = vunpack.c.l.b16 %v438
    %v542 = vunpack.c.l.b16 %v439
    %v543 = vunpack.c.l.b16 %v440
    %v544 = vunpack.c.l.b16 %v441
    %v545 = vunpack.c.l.b16 %v442
    %v546 = vunpack.c.l.b16 %v443
    %v547 = vunpack.c.l.b16 %v444
    %v548 = vunpack.c.l.b16 %v445
    %v549 = vunpack.c.l.b16 %v446
    %v550 = vunpack.c.l.b16 %v447
    %v551 = vunpack.c.l.b16 %v448
    %v552 = vpack.c.b16 %v505, %v504
    %v553 = vpack.c.b16 %v507, %v506
    %v554 = vpack.c.b16 %v509, %v508
    %v555 = vpack.c.b16 %v511, %v510
    %v556 = vpack.c.b16 %v513, %v512
    %v557 = vpack.c.b16 %v515, %v514
    %v558 = vpack.c.b16 %v517, %v516
    %v559 = vpack.c.b16 %v519, %v518
    %v560 = vpack.c.b16 %v521, %v520
    %v561 = vpack.c.b16 %v523, %v522
    %v562 = vpack.c.b16 %v525, %v524
    %v563 = vpack.c.b16 %v527, %v526
    %v564 = vpack.c.b16 %v529, %v528
    %v565 = vpack.c.b16 %v531, %v530
    %v566 = vpack.c.b16 %v533, %v532
    %v567 = vpack.c.b16 %v535, %v534
    %v568 = vpack.c.b16 %v537, %v536
    %v569 = vpack.c.b16 %v539, %v538
    %v570 = vpack.c.b16 %v541, %v540
    %v571 = vpack.c.b16 %v543, %v542
    %v572 = vpack.c.b16 %v545, %v544
    %v573 = vpack.c.b16 %v547, %v546
    %v574 = vpack.c.b16 %v549, %v548
    %v575 = vpack.c.b16 %v551, %v550
    %600 = vmatprep.subr.bf16.mxu0 0
    %601 = vmatpush1.bf16.msra.mxu0 %v552
    %602 = vmatprep.subr.bf16.mxu0 0
    %603 = vmatpush1.bf16.msra.mxu0 %v553
    %604 = vmatprep.subr.bf16.mxu0 0
    %605 = vmatpush1.bf16.msra.mxu0 %v554
    %606 = vmatprep.subr.bf16.mxu0 0
    %607 = vmatpush1.bf16.msra.mxu0 %v555
    %608 = vmatprep.subr.bf16.mxu0 0
    %609 = vmatpush1.bf16.msra.mxu0 %v556
    %610 = vmatprep.subr.bf16.mxu0 0
    %611 = vmatpush1.bf16.msra.mxu0 %v557
    %612 = vmatprep.subr.bf16.mxu0 0
    %613 = vmatpush1.bf16.msra.mxu0 %v558
    %614 = vmatprep.subr.bf16.mxu0 0
    %615 = vmatpush1.bf16.msra.mxu0 %v559
    %616 = vmatprep.subr.bf16.mxu0 0
    %617 = vmatpush1.bf16.msra.mxu0 %v560
    %618 = vmatprep.subr.bf16.mxu0 0
    %619 = vmatpush1.bf16.msra.mxu0 %v561
    %620 = vmatprep.subr.bf16.mxu0 0
    %621 = vmatpush1.bf16.msra.mxu0 %v562
    %622 = vmatprep.subr.bf16.mxu0 0
    %623 = vmatpush1.bf16.msra.mxu0 %v563
    %624 = vmatprep.subr.bf16.mxu0 0
    %625 = vmatpush1.bf16.msra.mxu0 %v564
    %626 = vmatprep.subr.bf16.mxu0 0
    %627 = vmatpush1.bf16.msra.mxu0 %v565
    %628 = vmatprep.subr.bf16.mxu0 0
    %629 = vmatpush1.bf16.msra.mxu0 %v566
    %630 = vmatprep.subr.bf16.mxu0 0
    %631 = vmatpush1.bf16.msra.mxu0 %v567
    %632 = vmatprep.mubr.bf16.mxu0 %v398
    %633 = vmatmul.mubr.bf16.gmra.mrb[0].mxu0 %v397
    %v634 = vpop.f32.mrb[0].mxu0
    %v635 = vadd.f32 %v454, %v634
    %v636 = vpop.f32.mrb[0].mxu0
    %v637 = vpop.f32.mrb[0].mxu0
    %v638 = vpop.f32.mrb[0].mxu0
    %639 = vdwg.mxu0
    %640 = vmatprep.subr.bf16.mxu0 0
    %641 = vmatpush1.bf16.msra.mxu0 %v568
    %642 = vmatprep.subr.bf16.mxu0 0
    %643 = vmatpush1.bf16.msra.mxu0 %v569
    %644 = vmatprep.subr.bf16.mxu0 0
    %645 = vmatpush1.bf16.msra.mxu0 %v570
    %646 = vmatprep.subr.bf16.mxu0 0
    %647 = vmatpush1.bf16.msra.mxu0 %v571
    %648 = vmatprep.subr.bf16.mxu0 0
    %649 = vmatpush1.bf16.msra.mxu0 %v572
    %650 = vmatprep.subr.bf16.mxu0 0
    %651 = vmatpush1.bf16.msra.mxu0 %v573
    %652 = vmatprep.subr.bf16.mxu0 0
    %653 = vmatpush1.bf16.msra.mxu0 %v574
    %654 = vmatprep.subr.bf16.mxu0 0
    %655 = vmatpush1.bf16.msra.mxu0 %v575
    %656 = vmatprep.subr.bf16.mxu0 0
    %657 = vmatpush1.bf16.msra.mxu0 0
    %658 = vmatprep.subr.bf16.mxu0 0
    %659 = vmatpush1.bf16.msra.mxu0 0
    %660 = vmatprep.subr.bf16.mxu0 0
    %661 = vmatpush1.bf16.msra.mxu0 0
    %662 = vmatprep.subr.bf16.mxu0 0
    %663 = vmatpush1.bf16.msra.mxu0 0
    %664 = vmatprep.subr.bf16.mxu0 0
    %665 = vmatpush1.bf16.msra.mxu0 0
    %666 = vmatprep.subr.bf16.mxu0 0
    %667 = vmatpush1.bf16.msra.mxu0 0
    %668 = vmatprep.subr.bf16.mxu0 0
    %669 = vmatpush1.bf16.msra.mxu0 0
    %670 = vmatprep.subr.bf16.mxu0 0
    %671 = vmatpush1.bf16.msra.mxu0 0
    %672 = vmatprep.mubr.bf16.mxu0 0
    %673 = vmatmul.mubr.bf16.gmra.mrb[0].mxu0 %v400
    %v674 = vpop.f32.mrb[0].mxu0
    %v675 = vadd.f32 %v635, %v674
    %v676 = vpop.f32.mrb[0].mxu0
    %v677 = vpop.f32.mrb[0].mxu0
    %v678 = vpop.f32.mrb[0].mxu0
    %679 = vdwg.mxu0
    %v680 = vmax.f32 %v675, 0.0
    %v681 = vpack.c.bf16 %v680, %v680
    %v682 = vld [vmem:[%s7] sm:$0xf]
    %v683 = vld [vmem:[%s7 + $0x4] sm:$0xf]
    %v684 = vld [vmem:[%s7 + $0x8] sm:$0xf]
    %v685 = vld [vmem:[%s7 + $0xc] sm:$0xf]
    %v686 = vld [vmem:[%s8] sm:$0x1]
    %v688 = vlaneseq
    %v689 = vshrl.u32 %v688, 7
    %v690 = vsub.s32 0, %v689
    %v691 = vrot.slane %v686, %v690
    %v697 = vunpack.c.l.b16 %v682
    %v698 = vunpack.c.l.b16 %v683
    %v699 = vunpack.c.l.b16 %v684
    %v700 = vunpack.c.l.b16 %v685
    %v701 = vpack.c.b16 %v698, %v697
    %v702 = vpack.c.b16 %v700, %v699
    %vm705 = vcmask 261120
    %v707 = vsel %vm705, %v681, 0
    %709 = vmatprep.subr.bf16.mxu0 0
    %710 = vmatpush1.bf16.msra.mxu0 %v701
    %711 = vmatprep.subr.bf16.mxu0 0
    %712 = vmatpush1.bf16.msra.mxu0 %v702
    %713 = vmatprep.subr.bf16.mxu0 0
    %714 = vmatpush1.bf16.msra.mxu0 0
    %715 = vmatprep.subr.bf16.mxu0 0
    %716 = vmatpush1.bf16.msra.mxu0 0
    %717 = vmatprep.subr.bf16.mxu0 0
    %718 = vmatpush1.bf16.msra.mxu0 0
    %719 = vmatprep.subr.bf16.mxu0 0
    %720 = vmatpush1.bf16.msra.mxu0 0
    %721 = vmatprep.subr.bf16.mxu0 0
    %722 = vmatpush1.bf16.msra.mxu0 0
    %723 = vmatprep.subr.bf16.mxu0 0
    %724 = vmatpush1.bf16.msra.mxu0 0
    %725 = vmatprep.subr.bf16.mxu0 0
    %726 = vmatpush1.bf16.msra.mxu0 0
    %727 = vmatprep.subr.bf16.mxu0 0
    %728 = vmatpush1.bf16.msra.mxu0 0
    %729 = vmatprep.subr.bf16.mxu0 0
    %730 = vmatpush1.bf16.msra.mxu0 0
    %731 = vmatprep.subr.bf16.mxu0 0
    %732 = vmatpush1.bf16.msra.mxu0 0
    %733 = vmatprep.subr.bf16.mxu0 0
    %734 = vmatpush1.bf16.msra.mxu0 0
    %735 = vmatprep.subr.bf16.mxu0 0
    %736 = vmatpush1.bf16.msra.mxu0 0
    %737 = vmatprep.subr.bf16.mxu0 0
    %738 = vmatpush1.bf16.msra.mxu0 0
    %739 = vmatprep.subr.bf16.mxu0 0
    %740 = vmatpush1.bf16.msra.mxu0 0
    %741 = vmatprep.mubr.bf16.mxu0 0
    %742 = vmatmul.mubr.bf16.gmra.mrb[0].mxu0 %v707
    %v743 = vpop.f32.mrb[0].mxu0
    %v744 = vadd.f32 %v691, %v743
    %v745 = vpop.f32.mrb[0].mxu0
    %v746 = vpop.f32.mrb[0].mxu0
    %v747 = vpop.f32.mrb[0].mxu0
    %748 = vdwg.mxu0
    %v749 = vmul.f32 %v744, 0.5
    %v750 = vtanh.pop %v749
    %v751 = vadd.f32 %v750, 1.0
    %v752 = vmul.f32 %v751, 0.5
    %753 = vst [vmem:[#allocation5] sm:$0xff] %v752
    // Predicated region
    $region42: #{tpu_custom_call.1} parent=1 // pred_check
      _
    $region43: #{tpu_custom_call.1} parent=1 // pred_check_branch
      %755 = sbr.rel (0) target = $region45
    $region44: #{tpu_custom_call.1} parent=1 // pred_region
      %s757 = ssub.s32 128, 128
      %758 = vsyncadd [#allocation4], %s757
      %s760 = sshll.u32 [#allocation5], 4
      %s761 = int_to_ptr.vmem [resolvable:$true] %s760
      %763 = dma.vmem_to_hbm [thread:$0]  %s761, 128, %s9, [#allocation4]
    $region45: #{tpu_custom_call.1} parent=1 // pred_fallthru
      _
    // Predicated region
    $region46: #{tpu_custom_call.1} parent=1 // pred_check
      _
    $region47: #{tpu_custom_call.1} parent=1 // pred_check_branch
      %765 = sbr.rel (0) target = $region49
    $region48: #{tpu_custom_call.1} parent=1 // pred_region
      %766 = dma.done [#allocation4], 128
    $region49: #{tpu_custom_call.1} parent=1 // pred_fallthru
      _
    %767 = vsyncpa [#allocation3], 1
    %768 = vsyncpa [#allocation4], 1

</llo_original>
